<compile_context>
chip_gen: v7x
topology: tpu7x:2x2x1
jax: 0.10.0
libtpu: 0.0.40
codegen_flags: <defaults>
</compile_context>

<pallas_src>
import jax
import jax.numpy as jnp
from jax.experimental import pallas as pl
from jax.experimental.pallas import tpu as pltpu

NUM_LAYERS = 6
_LANE = 128
_SUBLANE = 8
_V7X_SAFE_VMEM = 56 << 20          # stay below v7x's 64 MiB physical VMEM
_RESIDENT_VMEM_BUDGET = 44 << 20   # take the resident-weight path only if it fits


def _round_up(x, m):
    return ((x + m - 1) // m) * m


# --------------------------------------------------------------------------- #
# Kernels
# --------------------------------------------------------------------------- #
def _eyam_fused_kernel(wt_ref, b_ref, y_ref, out_ref):
    # wt_ref: (6, Hp, Hp)  (all layers resident, fetched once)
    # b_ref : (6, 1, Hp)   f32
    # y_ref / out_ref: (bm, Hp) f32
    x = y_ref[...]
    for i in range(NUM_LAYERS):            # static unroll: one grid step = 6 layers
        if i > 0:
            x = jnp.maximum(x, 0.0)        # ReLU stays in vregs, no VMEM round trip
        x = (jnp.dot(x.astype(wt_ref.dtype), wt_ref[i],
                     preferred_element_type=jnp.float32)
             + b_ref[i])
    out_ref[...] = x.astype(out_ref.dtype)


def _eyam_streamed_kernel(wt_ref, b_ref, y_ref, out_ref):
    # Fallback for large H: one layer per grid step, weights streamed.
    # wt_ref: (Hp, Hp)  (layer dim squeezed)    b_ref: (1, Hp) f32
    # out_ref doubles as the inter-layer accumulator (index_map constant in l).
    layer = pl.program_id(1)

    @pl.when(layer == 0)
    def _():
        out_ref[...] = y_ref[...]

    x = out_ref[...]
    x = jnp.where(layer > 0, jnp.maximum(x, 0.0), x)
    out_ref[...] = (
        jnp.dot(x.astype(wt_ref.dtype), wt_ref[...],
                preferred_element_type=jnp.float32)
        + b_ref[...]
    )


# --------------------------------------------------------------------------- #
# Wrapper
# --------------------------------------------------------------------------- #
def prepare_eyam_params(weights, biases, *, weight_dtype=jnp.bfloat16):
    """One-time parameter prep, hoisted out of the per-RHS-call path.

    weights: (6, H, H) f32, biases: (6, H) f32.
    Set weight_dtype=jnp.float32 for bit-faithful f32 semantics (slower MXU).
    """
    weights = jnp.asarray(weights, dtype=jnp.float32)
    biases = jnp.asarray(biases, dtype=jnp.float32)
    L, H, H2 = weights.shape
    assert L == NUM_LAYERS and H == H2 and biases.shape == (L, H)

    Hp = _round_up(max(H, _LANE), _LANE)                 # lane-dense hidden dim
    wT = jnp.swapaxes(weights, 1, 2).astype(weight_dtype)   # (6, H, H): y @ W^T
    b = biases.reshape(L, 1, H)                              # (6, 1, H) f32
    if Hp != H:
        wT = jnp.pad(wT, ((0, 0), (0, Hp - H), (0, Hp - H)))
        b = jnp.pad(b, ((0, 0), (0, 0), (0, Hp - H)))
    return {"wT": wT, "b": b, "H": H, "Hp": Hp}


def _choose_bm(B):
    if B <= _SUBLANE:
        return _SUBLANE
    if B <= 1024:
        # >= 2 batch tiles so v7x's second TensorCore gets work.
        return _round_up(-(-B // 2), _SUBLANE)
    return 512


def eyam_forward(t, y, params, *, force_streamed=False):
    """ODE RHS. y: (H,) or (B, H) f32. Returns same leading shape, f32."""
    del t  # unused, as in the PyTorch module

    wT, b, H, Hp = params["wT"], params["b"], params["H"], params["Hp"]
    wsize = wT.dtype.itemsize

    single = (y.ndim == 1)
    y2 = (y.reshape(1, -1) if single else y).astype(jnp.float32)
    B = y2.shape[0]
    assert y2.shape[1] == H

    bm = _choose_bm(B)
    Bp = _round_up(B, bm)
    num_b_tiles = Bp // bm
    if (Bp, Hp) != y2.shape:
        y2 = jnp.pad(y2, ((0, Bp - B), (0, Hp - H)))

    act_bytes = 4 * bm * Hp * 4                       # y + out, double-buffered f32
    resident_bytes = 2 * NUM_LAYERS * Hp * Hp * wsize + 2 * NUM_LAYERS * Hp * 4
    use_fused = (not force_streamed) and (
        resident_bytes + act_bytes <= _RESIDENT_VMEM_BUDGET)

    flops = 2 * Bp * Hp * Hp * NUM_LAYERS

    if use_fused:
        est = resident_bytes + act_bytes
        cost = pl.CostEstimate(
            flops=flops, transcendentals=0,
            bytes_accessed=int(wT.size) * wsize + int(b.size) * 4 + 2 * Bp * Hp * 4)
        grid_spec = pltpu.PrefetchScalarGridSpec(
            num_scalar_prefetch=0,
            grid=(num_b_tiles,),
            in_specs=[
                pl.BlockSpec((NUM_LAYERS, Hp, Hp), lambda i: (0, 0, 0)),  # resident
                pl.BlockSpec((NUM_LAYERS, 1, Hp), lambda i: (0, 0, 0)),
                pl.BlockSpec((bm, Hp), lambda i: (i, 0)),
            ],
            out_specs=pl.BlockSpec((bm, Hp), lambda i: (i, 0)),
        )
        kernel = _eyam_fused_kernel
        semantics = ("parallel",)
    else:
        # TODO(synk): for H where even a single (Hp,Hp) weight tile won't fit
        # VMEM (H >~ 4096 on v7x), add a K-contraction grid axis with an f32
        # accumulator instead of a full-(Hp,Hp) weight block.
        est = 2 * Hp * Hp * wsize + 2 * Hp * 4 + act_bytes
        cost = pl.CostEstimate(
            flops=flops, transcendentals=0,
            bytes_accessed=num_b_tiles * (int(wT.size) * wsize + int(b.size) * 4)
                           + 2 * Bp * Hp * 4)
        grid_spec = pltpu.PrefetchScalarGridSpec(
            num_scalar_prefetch=0,
            grid=(num_b_tiles, NUM_LAYERS),
            in_specs=[
                pl.BlockSpec((pl.Squeezed(), Hp, Hp), lambda i, l: (l, 0, 0)),
                pl.BlockSpec((pl.Squeezed(), 1, Hp), lambda i, l: (l, 0, 0)),
                pl.BlockSpec((bm, Hp), lambda i, l: (i, 0)),
            ],
            out_specs=pl.BlockSpec((bm, Hp), lambda i, l: (i, 0)),
        )
        kernel = _eyam_streamed_kernel
        semantics = ("parallel", "arbitrary")

    vmem_limit = int(min(max(est + (8 << 20), 32 << 20), _V7X_SAFE_VMEM))

    out = pl.pallas_call(
        kernel,
        out_shape=jax.ShapeDtypeStruct((Bp, Hp), jnp.float32),
        grid_spec=grid_spec,
        compiler_params=pltpu.CompilerParams(
            dimension_semantics=semantics,
            vmem_limit_bytes=vmem_limit),
        cost_estimate=cost,
    )(wT, b, y2)

    out = out[:B, :H]
    return out.reshape(-1) if single else out


# --------------------------------------------------------------------------- #
# Pure-JAX reference (torch semantics; weight_dtype=bf16 mirrors MXU precision)
# --------------------------------------------------------------------------- #
def _reference(t, y, weights, biases, weight_dtype=jnp.float32):
    del t
    single = (y.ndim == 1)
    yr = (y.reshape(1, -1) if single else y).astype(jnp.float32)
    wT = jnp.swapaxes(weights, 1, 2).astype(weight_dtype)
    for i in range(NUM_LAYERS):
        if i > 0:
            yr = jnp.maximum(yr, 0.0)
        yr = jnp.dot(yr.astype(weight_dtype), wT[i],
                     preferred_element_type=jnp.float32) + biases[i][None, :]
    return yr.reshape(-1) if single else yr


if __name__ == "__main__":
    H = 32   # hidden / state dimension
    B = 8    # batched-state example (e.g. multiple ODE-solver stages)

    key = jax.random.PRNGKey(0)
    kw, kb, ky, kyb = jax.random.split(key, 4)

    weights = (jax.random.normal(kw, (NUM_LAYERS, H, H), dtype=jnp.float32)
               * (1.0 / jnp.sqrt(H)))
    biases = jax.random.normal(kb, (NUM_LAYERS, H), dtype=jnp.float32) * 0.1
    y0 = jax.random.normal(ky, (H,), dtype=jnp.float32)
    yb = jax.random.normal(kyb, (B, H), dtype=jnp.float32)
    t0 = jnp.float32(0.0)

    params = prepare_eyam_params(weights, biases)     # hoisted one-time prep

    out1 = eyam_forward(t0, y0, params)               # fused path, single vector
    outb = eyam_forward(t0, yb, params)               # fused path, batched
    out1_s = eyam_forward(t0, y0, params, force_streamed=True)  # fallback path
    outb_s = eyam_forward(t0, yb, params, force_streamed=True)
    jax.block_until_ready((out1, outb, out1_s, outb_s))

    assert out1.shape == (H,)
    assert outb.shape == (B, H)

    # Tight check vs a precision-matched (bf16-MXU) reference.
    ref1_bf = _reference(t0, y0, weights, biases, weight_dtype=jnp.bfloat16)
    refb_bf = _reference(t0, yb, weights, biases, weight_dtype=jnp.bfloat16)
    assert jnp.allclose(out1, ref1_bf, atol=1e-3, rtol=1e-3), "mismatch vs bf16 reference"
    assert jnp.allclose(outb, refb_bf, atol=1e-3, rtol=1e-3), "batched mismatch vs bf16 reference"

    # Fused and streamed paths must agree with each other.
    assert jnp.allclose(out1_s, out1, atol=1e-5, rtol=1e-5), "streamed != fused"
    assert jnp.allclose(outb_s, outb, atol=1e-5, rtol=1e-5), "streamed != fused (batched)"

    # Loose check vs the exact f32 (torch-semantics) reference.
    ref1_f32 = _reference(t0, y0, weights, biases, weight_dtype=jnp.float32)
    refb_f32 = _reference(t0, yb, weights, biases, weight_dtype=jnp.float32)
    assert jnp.allclose(out1, ref1_f32, atol=5e-2, rtol=5e-2), "drift vs f32 reference"
    assert jnp.allclose(outb, refb_f32, atol=5e-2, rtol=5e-2), "batched drift vs f32 reference"

    print("KERNEL_OK")
</pallas_src>

<mosaic_0001>
module attributes {stable_mosaic.version = 11 : i64} {
  func.func @_eyam_fused_kernel(%arg0: i32, %arg1: memref<6x128x128xbf16, #tpu.memory_space<vmem>>, %arg2: memref<6x1x128xf32, #tpu.memory_space<vmem>>, %arg3: memref<8x128xf32, #tpu.memory_space<vmem>>, %arg4: memref<8x128xf32, #tpu.memory_space<vmem>>) attributes {dimension_semantics = [#tpu.dimension_semantics<parallel>], iteration_bounds = array<i64: 1>, scalar_prefetch = 0 : i64, scratch_operands = 0 : i64, tpu.core_type = #tpu.core_type<tc>, window_params = [{pipeline_mode = #tpu.pipeline_mode<synchronous>, transform_indices = @transform_0, window_bounds = array<i64: 6, 128, 128>}, {pipeline_mode = #tpu.pipeline_mode<synchronous>, transform_indices = @transform_1, window_bounds = array<i64: 6, 1, 128>}, {transform_indices = @transform_2, window_bounds = array<i64: 8, 128>}, {transform_indices = @transform_3, window_bounds = array<i64: 8, 128>}]} {
    %c0 = arith.constant 0 : index
    %c0_0 = arith.constant 0 : index
    %0 = vector.load %arg3[%c0, %c0_0] : memref<8x128xf32, #tpu.memory_space<vmem>>, vector<8x128xf32>
    %1 = arith.truncf %0 : vector<8x128xf32> to vector<8x128xbf16>
    %c0_1 = arith.constant 0 : index
    %c0_2 = arith.constant 0 : index
    %c0_3 = arith.constant 0 : index
    %2 = vector.load %arg1[%c0_1, %c0_2, %c0_3] : memref<6x128x128xbf16, #tpu.memory_space<vmem>>, vector<1x128x128xbf16>
    %3 = vector.shape_cast %2 : vector<1x128x128xbf16> to vector<128x128xbf16>
    %cst = arith.constant dense<0.000000e+00> : vector<8x128xf32>
    %4 = tpu.matmul %1, %3, %cst {dimension_numbers = #tpu.dot_dimension_numbers<[1], [0], [0], [1], [0, 0, 1, 1], [], []>} : vector<8x128xbf16>, vector<128x128xbf16>, vector<8x128xf32> -> vector<8x128xf32>
    %c0_4 = arith.constant 0 : index
    %c0_5 = arith.constant 0 : index
    %c0_6 = arith.constant 0 : index
    %5 = vector.load %arg2[%c0_4, %c0_5, %c0_6] : memref<6x1x128xf32, #tpu.memory_space<vmem>>, vector<1x1x128xf32>
    %6 = vector.shape_cast %5 : vector<1x1x128xf32> to vector<1x128xf32>
    %7 = vector.broadcast %6 : vector<1x128xf32> to vector<8x128xf32>
    %8 = arith.addf %4, %7 : vector<8x128xf32>
    %cst_7 = arith.constant 0.000000e+00 : f32
    %9 = vector.broadcast %cst_7 : f32 to vector<8x128xf32>
    %10 = arith.maximumf %8, %9 : vector<8x128xf32>
    %11 = arith.truncf %10 : vector<8x128xf32> to vector<8x128xbf16>
    %c1 = arith.constant 1 : index
    %c0_8 = arith.constant 0 : index
    %c0_9 = arith.constant 0 : index
    %12 = vector.load %arg1[%c1, %c0_8, %c0_9] : memref<6x128x128xbf16, #tpu.memory_space<vmem>>, vector<1x128x128xbf16>
    %13 = vector.shape_cast %12 : vector<1x128x128xbf16> to vector<128x128xbf16>
    %cst_10 = arith.constant dense<0.000000e+00> : vector<8x128xf32>
    %14 = tpu.matmul %11, %13, %cst_10 {dimension_numbers = #tpu.dot_dimension_numbers<[1], [0], [0], [1], [0, 0, 1, 1], [], []>} : vector<8x128xbf16>, vector<128x128xbf16>, vector<8x128xf32> -> vector<8x128xf32>
    %c1_11 = arith.constant 1 : index
    %c0_12 = arith.constant 0 : index
    %c0_13 = arith.constant 0 : index
    %15 = vector.load %arg2[%c1_11, %c0_12, %c0_13] : memref<6x1x128xf32, #tpu.memory_space<vmem>>, vector<1x1x128xf32>
    %16 = vector.shape_cast %15 : vector<1x1x128xf32> to vector<1x128xf32>
    %17 = vector.broadcast %16 : vector<1x128xf32> to vector<8x128xf32>
    %18 = arith.addf %14, %17 : vector<8x128xf32>
    %cst_14 = arith.constant 0.000000e+00 : f32
    %19 = vector.broadcast %cst_14 : f32 to vector<8x128xf32>
    %20 = arith.maximumf %18, %19 : vector<8x128xf32>
    %21 = arith.truncf %20 : vector<8x128xf32> to vector<8x128xbf16>
    %c2 = arith.constant 2 : index
    %c0_15 = arith.constant 0 : index
    %c0_16 = arith.constant 0 : index
    %22 = vector.load %arg1[%c2, %c0_15, %c0_16] : memref<6x128x128xbf16, #tpu.memory_space<vmem>>, vector<1x128x128xbf16>
    %23 = vector.shape_cast %22 : vector<1x128x128xbf16> to vector<128x128xbf16>
    %cst_17 = arith.constant dense<0.000000e+00> : vector<8x128xf32>
    %24 = tpu.matmul %21, %23, %cst_17 {dimension_numbers = #tpu.dot_dimension_numbers<[1], [0], [0], [1], [0, 0, 1, 1], [], []>} : vector<8x128xbf16>, vector<128x128xbf16>, vector<8x128xf32> -> vector<8x128xf32>
    %c2_18 = arith.constant 2 : index
    %c0_19 = arith.constant 0 : index
    %c0_20 = arith.constant 0 : index
    %25 = vector.load %arg2[%c2_18, %c0_19, %c0_20] : memref<6x1x128xf32, #tpu.memory_space<vmem>>, vector<1x1x128xf32>
    %26 = vector.shape_cast %25 : vector<1x1x128xf32> to vector<1x128xf32>
    %27 = vector.broadcast %26 : vector<1x128xf32> to vector<8x128xf32>
    %28 = arith.addf %24, %27 : vector<8x128xf32>
    %cst_21 = arith.constant 0.000000e+00 : f32
    %29 = vector.broadcast %cst_21 : f32 to vector<8x128xf32>
    %30 = arith.maximumf %28, %29 : vector<8x128xf32>
    %31 = arith.truncf %30 : vector<8x128xf32> to vector<8x128xbf16>
    %c3 = arith.constant 3 : index
    %c0_22 = arith.constant 0 : index
    %c0_23 = arith.constant 0 : index
    %32 = vector.load %arg1[%c3, %c0_22, %c0_23] : memref<6x128x128xbf16, #tpu.memory_space<vmem>>, vector<1x128x128xbf16>
    %33 = vector.shape_cast %32 : vector<1x128x128xbf16> to vector<128x128xbf16>
    %cst_24 = arith.constant dense<0.000000e+00> : vector<8x128xf32>
    %34 = tpu.matmul %31, %33, %cst_24 {dimension_numbers = #tpu.dot_dimension_numbers<[1], [0], [0], [1], [0, 0, 1, 1], [], []>} : vector<8x128xbf16>, vector<128x128xbf16>, vector<8x128xf32> -> vector<8x128xf32>
    %c3_25 = arith.constant 3 : index
    %c0_26 = arith.constant 0 : index
    %c0_27 = arith.constant 0 : index
    %35 = vector.load %arg2[%c3_25, %c0_26, %c0_27] : memref<6x1x128xf32, #tpu.memory_space<vmem>>, vector<1x1x128xf32>
    %36 = vector.shape_cast %35 : vector<1x1x128xf32> to vector<1x128xf32>
    %37 = vector.broadcast %36 : vector<1x128xf32> to vector<8x128xf32>
    %38 = arith.addf %34, %37 : vector<8x128xf32>
    %cst_28 = arith.constant 0.000000e+00 : f32
    %39 = vector.broadcast %cst_28 : f32 to vector<8x128xf32>
    %40 = arith.maximumf %38, %39 : vector<8x128xf32>
    %41 = arith.truncf %40 : vector<8x128xf32> to vector<8x128xbf16>
    %c4 = arith.constant 4 : index
    %c0_29 = arith.constant 0 : index
    %c0_30 = arith.constant 0 : index
    %42 = vector.load %arg1[%c4, %c0_29, %c0_30] : memref<6x128x128xbf16, #tpu.memory_space<vmem>>, vector<1x128x128xbf16>
    %43 = vector.shape_cast %42 : vector<1x128x128xbf16> to vector<128x128xbf16>
    %cst_31 = arith.constant dense<0.000000e+00> : vector<8x128xf32>
    %44 = tpu.matmul %41, %43, %cst_31 {dimension_numbers = #tpu.dot_dimension_numbers<[1], [0], [0], [1], [0, 0, 1, 1], [], []>} : vector<8x128xbf16>, vector<128x128xbf16>, vector<8x128xf32> -> vector<8x128xf32>
    %c4_32 = arith.constant 4 : index
    %c0_33 = arith.constant 0 : index
    %c0_34 = arith.constant 0 : index
    %45 = vector.load %arg2[%c4_32, %c0_33, %c0_34] : memref<6x1x128xf32, #tpu.memory_space<vmem>>, vector<1x1x128xf32>
    %46 = vector.shape_cast %45 : vector<1x1x128xf32> to vector<1x128xf32>
    %47 = vector.broadcast %46 : vector<1x128xf32> to vector<8x128xf32>
    %48 = arith.addf %44, %47 : vector<8x128xf32>
    %cst_35 = arith.constant 0.000000e+00 : f32
    %49 = vector.broadcast %cst_35 : f32 to vector<8x128xf32>
    %50 = arith.maximumf %48, %49 : vector<8x128xf32>
    %51 = arith.truncf %50 : vector<8x128xf32> to vector<8x128xbf16>
    %c5 = arith.constant 5 : index
    %c0_36 = arith.constant 0 : index
    %c0_37 = arith.constant 0 : index
    %52 = vector.load %arg1[%c5, %c0_36, %c0_37] : memref<6x128x128xbf16, #tpu.memory_space<vmem>>, vector<1x128x128xbf16>
    %53 = vector.shape_cast %52 : vector<1x128x128xbf16> to vector<128x128xbf16>
    %cst_38 = arith.constant dense<0.000000e+00> : vector<8x128xf32>
    %54 = tpu.matmul %51, %53, %cst_38 {dimension_numbers = #tpu.dot_dimension_numbers<[1], [0], [0], [1], [0, 0, 1, 1], [], []>} : vector<8x128xbf16>, vector<128x128xbf16>, vector<8x128xf32> -> vector<8x128xf32>
    %c5_39 = arith.constant 5 : index
    %c0_40 = arith.constant 0 : index
    %c0_41 = arith.constant 0 : index
    %55 = vector.load %arg2[%c5_39, %c0_40, %c0_41] : memref<6x1x128xf32, #tpu.memory_space<vmem>>, vector<1x1x128xf32>
    %56 = vector.shape_cast %55 : vector<1x1x128xf32> to vector<1x128xf32>
    %57 = vector.broadcast %56 : vector<1x128xf32> to vector<8x128xf32>
    %58 = arith.addf %54, %57 : vector<8x128xf32>
    %c0_42 = arith.constant 0 : index
    %c0_43 = arith.constant 0 : index
    %59 = vector.load %arg4[%c0_42, %c0_43] : memref<8x128xf32, #tpu.memory_space<vmem>>, vector<8x128xf32>
    tpu.vector_store %arg4[%c0_42, %c0_43], %58 {strides = array<i32>} : memref<8x128xf32, #tpu.memory_space<vmem>>, vector<8x128xf32>,
    return
  }
  func.func @transform_0(%arg0: i32) -> (i32, i32, i32) {
    %c0_i32 = arith.constant 0 : i32
    %c0_i32_0 = arith.constant 0 : i32
    %c0_i32_1 = arith.constant 0 : i32
    %c0_i32_2 = arith.constant 0 : i32
    return %c0_i32, %c0_i32_0, %c0_i32_1 : i32, i32, i32
  }
  func.func @transform_1(%arg0: i32) -> (i32, i32, i32) {
    %c0_i32 = arith.constant 0 : i32
    %c0_i32_0 = arith.constant 0 : i32
    %c0_i32_1 = arith.constant 0 : i32
    %c0_i32_2 = arith.constant 0 : i32
    return %c0_i32, %c0_i32_0, %c0_i32_1 : i32, i32, i32
  }
  func.func @transform_2(%arg0: i32) -> (i32, i32) {
    %c0_i32 = arith.constant 0 : i32
    %c0_i32_0 = arith.constant 0 : i32
    return %arg0, %c0_i32 : i32, i32
  }
  func.func @transform_3(%arg0: i32) -> (i32, i32) {
    %c0_i32 = arith.constant 0 : i32
    %c0_i32_0 = arith.constant 0 : i32
    return %arg0, %c0_i32 : i32, i32
  }
}

</mosaic_0001>

<llo_original>
// kernel: tpu_custom_call.1
$region0: #{tpu_custom_call.1}
  #allocation0 [shape = 'u32[]', space=smem, size = 0x4, offset = 0x4, fixed_abs, tag = 'smem constant byte address 0x4 - core index']
  #allocation1 [shape = 'u32[144,128]{1,0:T(1,128)}', space=vmem, size = 0x12000, scoped, tag = 'internal scratch']
  %s0 = inlined_call_operand.hbm [shape: bf16[6,128,128], index: 0, kind: input, shape index: {}]
  %s1 = inlined_call_operand.hbm [shape: f32[6,1,128], index: 1, kind: input, shape index: {}]
  %s2 = inlined_call_operand.hbm [shape: f32[8,128], index: 2, kind: input, shape index: {}]
  %s3 = inlined_call_operand.hbm [shape: f32[8,128], index: 3, kind: output, shape index: {}]
  %s4 = sld [smem:[#allocation0]]
  $region34: #{tpu_custom_call.1} parent=0
    _
  %s6 = ssub.s32 1, %s4
  %s7 = scalar_select 0, %s6, %s4
  $region1: #{tpu_custom_call.1} parent=0
    #allocation2 [shape = 'u8[196608]{0}', space=vmem, size = 0x30000, scoped, tag = 'input window, operand 0, single buffered']
    #allocation3 [shape = 's32[1]{0}', space=sflag, size = 0x4, scoped, tag = 'scoped memory for tpu_custom_call.1']
    #allocation4 [shape = 's32[1]{0}', space=sflag, size = 0x4, scoped, tag = 'scoped memory for tpu_custom_call.1']
    #allocation5 [shape = 'u8[3072]{0}', space=vmem, size = 0xc00, scoped, tag = 'input window, operand 1, single buffered']
    #allocation6 [shape = 's32[1]{0}', space=sflag, size = 0x4, scoped, tag = 'scoped memory for tpu_custom_call.1']
    #allocation7 [shape = 'u8[4096]{0}', space=vmem, size = 0x1000, scoped, tag = 'input window, operand 2, single buffered']
    #allocation8 [shape = 'u8[4096]{0}', space=vmem, size = 0x1000, scoped, tag = 'output window, operand 0, single buffered']
    %8 = vsyncpa [#allocation3], 0
    %9 = vsyncpa [#allocation6], 0
    %10 = vsyncpa [#allocation4], 0
    // Predicated region
    $region2: #{tpu_custom_call.1} parent=1 // pred_check
      _
    $region3: #{tpu_custom_call.1} parent=1 // pred_check_branch
      %12 = sbr.rel (0) target = $region5
    $region4: #{tpu_custom_call.1} parent=1 // pred_region
      %s14 = ssub.s32 6144, 6144
      %15 = vsyncadd [#allocation3], %s14
      %s16 = sshll.u32 [#allocation2], 4
      %s17 = int_to_ptr.vmem [resolvable:$true] %s16
      %22 = dma.hbm_to_vmem [thread:$0]  %s0, 6144, %s17, [#allocation3], 64, 64, 4
    $region5: #{tpu_custom_call.1} parent=1 // pred_fallthru
      _
    // Predicated region
    $region6: #{tpu_custom_call.1} parent=1 // pred_check
      _
    $region7: #{tpu_custom_call.1} parent=1 // pred_check_branch
      %24 = sbr.rel (0) target = $region9
    $region8: #{tpu_custom_call.1} parent=1 // pred_region
      %s26 = ssub.s32 96, 96
      %27 = vsyncadd [#allocation6], %s26
      %s28 = sshll.u32 [#allocation5], 4
      %s29 = int_to_ptr.vmem [resolvable:$true] %s28
      %34 = dma.hbm_to_vmem [thread:$0]  %s1, 96, %s29, [#allocation6], 16, 16, 1
    $region9: #{tpu_custom_call.1} parent=1 // pred_fallthru
      _
    // Predicated region
    $region10: #{tpu_custom_call.1} parent=1 // pred_check
      _
    $region11: #{tpu_custom_call.1} parent=1 // pred_check_branch
      %36 = sbr.rel (0) target = $region13
    $region12: #{tpu_custom_call.1} parent=1 // pred_region
      %s38 = ssub.s32 128, 128
      %39 = vsyncadd [#allocation6], %s38
      %s41 = sshll.u32 [#allocation7], 4
      %s42 = int_to_ptr.vmem [resolvable:$true] %s41
      %44 = dma.hbm_to_vmem [thread:$0]  %s2, 128, %s42, [#allocation6]
    $region13: #{tpu_custom_call.1} parent=1 // pred_fallthru
      _
    // Predicated region
    $region14: #{tpu_custom_call.1} parent=1 // pred_check
      _
    $region15: #{tpu_custom_call.1} parent=1 // pred_check_branch
      %46 = sbr.rel (0) target = $region17
    $region16: #{tpu_custom_call.1} parent=1 // pred_region
      %47 = dma.done [#allocation3], 6144
    $region17: #{tpu_custom_call.1} parent=1 // pred_fallthru
      _
    // Predicated region
    $region18: #{tpu_custom_call.1} parent=1 // pred_check
      _
    $region19: #{tpu_custom_call.1} parent=1 // pred_check_branch
      %49 = sbr.rel (0) target = $region21
    $region20: #{tpu_custom_call.1} parent=1 // pred_region
      %50 = dma.done [#allocation6], 96
    $region21: #{tpu_custom_call.1} parent=1 // pred_fallthru
      _
    // Predicated region
    $region22: #{tpu_custom_call.1} parent=1 // pred_check
      _
    $region23: #{tpu_custom_call.1} parent=1 // pred_check_branch
      %52 = sbr.rel (0) target = $region25
    $region24: #{tpu_custom_call.1} parent=1 // pred_region
      %53 = dma.done [#allocation6], 128
    $region25: #{tpu_custom_call.1} parent=1 // pred_fallthru
      _
    %v55 = vld [vmem:[#allocation7] sm:$0xff]
    %v56 = vpack.c.bf16 %v55, %v55
    %v57 = vld [vmem:[#allocation2] sm:$0xf]
    %v58 = vld [vmem:[#allocation2 + $0x4] sm:$0xf]
    %v59 = vld [vmem:[#allocation2 + $0x8] sm:$0xf]
    %v60 = vld [vmem:[#allocation2 + $0xc] sm:$0xf]
    %v61 = vld [vmem:[#allocation2 + $0x10] sm:$0xf]
    %v62 = vld [vmem:[#allocation2 + $0x14] sm:$0xf]
    %v63 = vld [vmem:[#allocation2 + $0x18] sm:$0xf]
    %v64 = vld [vmem:[#allocation2 + $0x1c] sm:$0xf]
    %v65 = vld [vmem:[#allocation2 + $0x20] sm:$0xf]
    %v66 = vld [vmem:[#allocation2 + $0x24] sm:$0xf]
    %v67 = vld [vmem:[#allocation2 + $0x28] sm:$0xf]
    %v68 = vld [vmem:[#allocation2 + $0x2c] sm:$0xf]
    %v69 = vld [vmem:[#allocation2 + $0x30] sm:$0xf]
    %v70 = vld [vmem:[#allocation2 + $0x34] sm:$0xf]
    %v71 = vld [vmem:[#allocation2 + $0x38] sm:$0xf]
    %v72 = vld [vmem:[#allocation2 + $0x3c] sm:$0xf]
    %v73 = vld [vmem:[#allocation5] sm:$0x1]
    %v75 = vlaneseq
    %v76 = vshrl.u32 %v75, 7
    %v77 = vsub.s32 0, %v76
    %v78 = vrot.slane %v73, %v77
    %v96 = vunpack.c.l.b16 %v57
    %v97 = vunpack.c.l.b16 %v58
    %v98 = vunpack.c.l.b16 %v59
    %v99 = vunpack.c.l.b16 %v60
    %v100 = vunpack.c.l.b16 %v61
    %v101 = vunpack.c.l.b16 %v62
    %v102 = vunpack.c.l.b16 %v63
    %v103 = vunpack.c.l.b16 %v64
    %v104 = vunpack.c.l.b16 %v65
    %v105 = vunpack.c.l.b16 %v66
    %v106 = vunpack.c.l.b16 %v67
    %v107 = vunpack.c.l.b16 %v68
    %v108 = vunpack.c.l.b16 %v69
    %v109 = vunpack.c.l.b16 %v70
    %v110 = vunpack.c.l.b16 %v71
    %v111 = vunpack.c.l.b16 %v72
    %v112 = vpack.c.b16 %v97, %v96
    %v113 = vpack.c.b16 %v99, %v98
    %v114 = vpack.c.b16 %v101, %v100
    %v115 = vpack.c.b16 %v103, %v102
    %v116 = vpack.c.b16 %v105, %v104
    %v117 = vpack.c.b16 %v107, %v106
    %v118 = vpack.c.b16 %v109, %v108
    %v119 = vpack.c.b16 %v111, %v110
    %128 = vmatprep.subr.bf16.mxu0 0
    %129 = vmatpush1.bf16.msra.mxu0 %v112
    %130 = vmatprep.subr.bf16.mxu0 0
    %131 = vmatpush1.bf16.msra.mxu0 %v113
    %132 = vmatprep.subr.bf16.mxu0 0
    %133 = vmatpush1.bf16.msra.mxu0 %v114
    %134 = vmatprep.subr.bf16.mxu0 0
    %135 = vmatpush1.bf16.msra.mxu0 %v115
    %136 = vmatprep.subr.bf16.mxu0 0
    %137 = vmatpush1.bf16.msra.mxu0 %v116
    %138 = vmatprep.subr.bf16.mxu0 0
    %139 = vmatpush1.bf16.msra.mxu0 %v117
    %140 = vmatprep.subr.bf16.mxu0 0
    %141 = vmatpush1.bf16.msra.mxu0 %v118
    %142 = vmatprep.subr.bf16.mxu0 0
    %143 = vmatpush1.bf16.msra.mxu0 %v119
    %144 = vmatprep.subr.bf16.mxu0 0
    %145 = vmatpush1.bf16.msra.mxu0 0
    %146 = vmatprep.subr.bf16.mxu0 0
    %147 = vmatpush1.bf16.msra.mxu0 0
    %148 = vmatprep.subr.bf16.mxu0 0
    %149 = vmatpush1.bf16.msra.mxu0 0
    %150 = vmatprep.subr.bf16.mxu0 0
    %151 = vmatpush1.bf16.msra.mxu0 0
    %152 = vmatprep.subr.bf16.mxu0 0
    %153 = vmatpush1.bf16.msra.mxu0 0
    %154 = vmatprep.subr.bf16.mxu0 0
    %155 = vmatpush1.bf16.msra.mxu0 0
    %156 = vmatprep.subr.bf16.mxu0 0
    %157 = vmatpush1.bf16.msra.mxu0 0
    %158 = vmatprep.subr.bf16.mxu0 0
    %159 = vmatpush1.bf16.msra.mxu0 0
    %160 = vmatprep.mubr.bf16.mxu0 0
    %161 = vmatmul.mubr.bf16.gmra.mrb[0].mxu0 %v56
    %v162 = vpop.f32.mrb[0].mxu0
    %v163 = vadd.f32 %v78, %v162
    %v164 = vpop.f32.mrb[0].mxu0
    %v165 = vpop.f32.mrb[0].mxu0
    %v166 = vpop.f32.mrb[0].mxu0
    %167 = vdwg.mxu0
    %v168 = vmax.f32 %v163, 0.0
    %v169 = vpack.c.bf16 %v168, %v168
    %s170 = scalar_lea.vmem [#allocation2], 64
    %v171 = vld [vmem:[%s170] sm:$0xf]
    %v172 = vld [vmem:[%s170 + $0x4] sm:$0xf]
    %v173 = vld [vmem:[%s170 + $0x8] sm:$0xf]
    %v174 = vld [vmem:[%s170 + $0xc] sm:$0xf]
    %v175 = vld [vmem:[%s170 + $0x10] sm:$0xf]
    %v176 = vld [vmem:[%s170 + $0x14] sm:$0xf]
    %v177 = vld [vmem:[%s170 + $0x18] sm:$0xf]
    %v178 = vld [vmem:[%s170 + $0x1c] sm:$0xf]
    %v179 = vld [vmem:[%s170 + $0x20] sm:$0xf]
    %v180 = vld [vmem:[%s170 + $0x24] sm:$0xf]
    %v181 = vld [vmem:[%s170 + $0x28] sm:$0xf]
    %v182 = vld [vmem:[%s170 + $0x2c] sm:$0xf]
    %v183 = vld [vmem:[%s170 + $0x30] sm:$0xf]
    %v184 = vld [vmem:[%s170 + $0x34] sm:$0xf]
    %v185 = vld [vmem:[%s170 + $0x38] sm:$0xf]
    %v186 = vld [vmem:[%s170 + $0x3c] sm:$0xf]
    %s187 = scalar_lea.vmem [#allocation5], 1
    %v188 = vld [vmem:[%s187] sm:$0x1]
    %v190 = vlaneseq
    %v191 = vshrl.u32 %v190, 7
    %v192 = vsub.s32 0, %v191
    %v193 = vrot.slane %v188, %v192
    %v211 = vunpack.c.l.b16 %v171
    %v212 = vunpack.c.l.b16 %v172
    %v213 = vunpack.c.l.b16 %v173
    %v214 = vunpack.c.l.b16 %v174
    %v215 = vunpack.c.l.b16 %v175
    %v216 = vunpack.c.l.b16 %v176
    %v217 = vunpack.c.l.b16 %v177
    %v218 = vunpack.c.l.b16 %v178
    %v219 = vunpack.c.l.b16 %v179
    %v220 = vunpack.c.l.b16 %v180
    %v221 = vunpack.c.l.b16 %v181
    %v222 = vunpack.c.l.b16 %v182
    %v223 = vunpack.c.l.b16 %v183
    %v224 = vunpack.c.l.b16 %v184
    %v225 = vunpack.c.l.b16 %v185
    %v226 = vunpack.c.l.b16 %v186
    %v227 = vpack.c.b16 %v212, %v211
    %v228 = vpack.c.b16 %v214, %v213
    %v229 = vpack.c.b16 %v216, %v215
    %v230 = vpack.c.b16 %v218, %v217
    %v231 = vpack.c.b16 %v220, %v219
    %v232 = vpack.c.b16 %v222, %v221
    %v233 = vpack.c.b16 %v224, %v223
    %v234 = vpack.c.b16 %v226, %v225
    %243 = vmatprep.subr.bf16.mxu0 0
    %244 = vmatpush1.bf16.msra.mxu0 %v227
    %245 = vmatprep.subr.bf16.mxu0 0
    %246 = vmatpush1.bf16.msra.mxu0 %v228
    %247 = vmatprep.subr.bf16.mxu0 0
    %248 = vmatpush1.bf16.msra.mxu0 %v229
    %249 = vmatprep.subr.bf16.mxu0 0
    %250 = vmatpush1.bf16.msra.mxu0 %v230
    %251 = vmatprep.subr.bf16.mxu0 0
    %252 = vmatpush1.bf16.msra.mxu0 %v231
    %253 = vmatprep.subr.bf16.mxu0 0
    %254 = vmatpush1.bf16.msra.mxu0 %v232
    %255 = vmatprep.subr.bf16.mxu0 0
    %256 = vmatpush1.bf16.msra.mxu0 %v233
    %257 = vmatprep.subr.bf16.mxu0 0
    %258 = vmatpush1.bf16.msra.mxu0 %v234
    %259 = vmatprep.subr.bf16.mxu0 0
    %260 = vmatpush1.bf16.msra.mxu0 0
    %261 = vmatprep.subr.bf16.mxu0 0
    %262 = vmatpush1.bf16.msra.mxu0 0
    %263 = vmatprep.subr.bf16.mxu0 0
    %264 = vmatpush1.bf16.msra.mxu0 0
    %265 = vmatprep.subr.bf16.mxu0 0
    %266 = vmatpush1.bf16.msra.mxu0 0
    %267 = vmatprep.subr.bf16.mxu0 0
    %268 = vmatpush1.bf16.msra.mxu0 0
    %269 = vmatprep.subr.bf16.mxu0 0
    %270 = vmatpush1.bf16.msra.mxu0 0
    %271 = vmatprep.subr.bf16.mxu0 0
    %272 = vmatpush1.bf16.msra.mxu0 0
    %273 = vmatprep.subr.bf16.mxu0 0
    %274 = vmatpush1.bf16.msra.mxu0 0
    %275 = vmatprep.mubr.bf16.mxu0 0
    %276 = vmatmul.mubr.bf16.gmra.mrb[0].mxu0 %v169
    %v277 = vpop.f32.mrb[0].mxu0
    %v278 = vadd.f32 %v193, %v277
    %v279 = vpop.f32.mrb[0].mxu0
    %v280 = vpop.f32.mrb[0].mxu0
    %v281 = vpop.f32.mrb[0].mxu0
    %282 = vdwg.mxu0
    %v283 = vmax.f32 %v278, 0.0
    %v284 = vpack.c.bf16 %v283, %v283
    %s285 = scalar_lea.vmem [#allocation2], 128
    %v286 = vld [vmem:[%s285] sm:$0xf]
    %v287 = vld [vmem:[%s285 + $0x4] sm:$0xf]
    %v288 = vld [vmem:[%s285 + $0x8] sm:$0xf]
    %v289 = vld [vmem:[%s285 + $0xc] sm:$0xf]
    %v290 = vld [vmem:[%s285 + $0x10] sm:$0xf]
    %v291 = vld [vmem:[%s285 + $0x14] sm:$0xf]
    %v292 = vld [vmem:[%s285 + $0x18] sm:$0xf]
    %v293 = vld [vmem:[%s285 + $0x1c] sm:$0xf]
    %v294 = vld [vmem:[%s285 + $0x20] sm:$0xf]
    %v295 = vld [vmem:[%s285 + $0x24] sm:$0xf]
    %v296 = vld [vmem:[%s285 + $0x28] sm:$0xf]
    %v297 = vld [vmem:[%s285 + $0x2c] sm:$0xf]
    %v298 = vld [vmem:[%s285 + $0x30] sm:$0xf]
    %v299 = vld [vmem:[%s285 + $0x34] sm:$0xf]
    %v300 = vld [vmem:[%s285 + $0x38] sm:$0xf]
    %v301 = vld [vmem:[%s285 + $0x3c] sm:$0xf]
    %s302 = scalar_lea.vmem [#allocation5], 2
    %v303 = vld [vmem:[%s302] sm:$0x1]
    %v305 = vlaneseq
    %v306 = vshrl.u32 %v305, 7
    %v307 = vsub.s32 0, %v306
    %v308 = vrot.slane %v303, %v307
    %v326 = vunpack.c.l.b16 %v286
    %v327 = vunpack.c.l.b16 %v287
    %v328 = vunpack.c.l.b16 %v288
    %v329 = vunpack.c.l.b16 %v289
    %v330 = vunpack.c.l.b16 %v290
    %v331 = vunpack.c.l.b16 %v291
    %v332 = vunpack.c.l.b16 %v292
    %v333 = vunpack.c.l.b16 %v293
    %v334 = vunpack.c.l.b16 %v294
    %v335 = vunpack.c.l.b16 %v295
    %v336 = vunpack.c.l.b16 %v296
    %v337 = vunpack.c.l.b16 %v297
    %v338 = vunpack.c.l.b16 %v298
    %v339 = vunpack.c.l.b16 %v299
    %v340 = vunpack.c.l.b16 %v300
    %v341 = vunpack.c.l.b16 %v301
    %v342 = vpack.c.b16 %v327, %v326
    %v343 = vpack.c.b16 %v329, %v328
    %v344 = vpack.c.b16 %v331, %v330
    %v345 = vpack.c.b16 %v333, %v332
    %v346 = vpack.c.b16 %v335, %v334
    %v347 = vpack.c.b16 %v337, %v336
    %v348 = vpack.c.b16 %v339, %v338
    %v349 = vpack.c.b16 %v341, %v340
    %358 = vmatprep.subr.bf16.mxu0 0
    %359 = vmatpush1.bf16.msra.mxu0 %v342
    %360 = vmatprep.subr.bf16.mxu0 0
    %361 = vmatpush1.bf16.msra.mxu0 %v343
    %362 = vmatprep.subr.bf16.mxu0 0
    %363 = vmatpush1.bf16.msra.mxu0 %v344
    %364 = vmatprep.subr.bf16.mxu0 0
    %365 = vmatpush1.bf16.msra.mxu0 %v345
    %366 = vmatprep.subr.bf16.mxu0 0
    %367 = vmatpush1.bf16.msra.mxu0 %v346
    %368 = vmatprep.subr.bf16.mxu0 0
    %369 = vmatpush1.bf16.msra.mxu0 %v347
    %370 = vmatprep.subr.bf16.mxu0 0
    %371 = vmatpush1.bf16.msra.mxu0 %v348
    %372 = vmatprep.subr.bf16.mxu0 0
    %373 = vmatpush1.bf16.msra.mxu0 %v349
    %374 = vmatprep.subr.bf16.mxu0 0
    %375 = vmatpush1.bf16.msra.mxu0 0
    %376 = vmatprep.subr.bf16.mxu0 0
    %377 = vmatpush1.bf16.msra.mxu0 0
    %378 = vmatprep.subr.bf16.mxu0 0
    %379 = vmatpush1.bf16.msra.mxu0 0
    %380 = vmatprep.subr.bf16.mxu0 0
    %381 = vmatpush1.bf16.msra.mxu0 0
    %382 = vmatprep.subr.bf16.mxu0 0
    %383 = vmatpush1.bf16.msra.mxu0 0
    %384 = vmatprep.subr.bf16.mxu0 0
    %385 = vmatpush1.bf16.msra.mxu0 0
    %386 = vmatprep.subr.bf16.mxu0 0
    %387 = vmatpush1.bf16.msra.mxu0 0
    %388 = vmatprep.subr.bf16.mxu0 0
    %389 = vmatpush1.bf16.msra.mxu0 0
    %390 = vmatprep.mubr.bf16.mxu0 0
    %391 = vmatmul.mubr.bf16.gmra.mrb[0].mxu0 %v284
    %v392 = vpop.f32.mrb[0].mxu0
    %v393 = vadd.f32 %v308, %v392
    %v394 = vpop.f32.mrb[0].mxu0
    %v395 = vpop.f32.mrb[0].mxu0
    %v396 = vpop.f32.mrb[0].mxu0
    %397 = vdwg.mxu0
    %v398 = vmax.f32 %v393, 0.0
    %v399 = vpack.c.bf16 %v398, %v398
    %s400 = scalar_lea.vmem [#allocation2], 192
    %v401 = vld [vmem:[%s400] sm:$0xf]
    %v402 = vld [vmem:[%s400 + $0x4] sm:$0xf]
    %v403 = vld [vmem:[%s400 + $0x8] sm:$0xf]
    %v404 = vld [vmem:[%s400 + $0xc] sm:$0xf]
    %v405 = vld [vmem:[%s400 + $0x10] sm:$0xf]
    %v406 = vld [vmem:[%s400 + $0x14] sm:$0xf]
    %v407 = vld [vmem:[%s400 + $0x18] sm:$0xf]
    %v408 = vld [vmem:[%s400 + $0x1c] sm:$0xf]
    %v409 = vld [vmem:[%s400 + $0x20] sm:$0xf]
    %v410 = vld [vmem:[%s400 + $0x24] sm:$0xf]
    %v411 = vld [vmem:[%s400 + $0x28] sm:$0xf]
    %v412 = vld [vmem:[%s400 + $0x2c] sm:$0xf]
    %v413 = vld [vmem:[%s400 + $0x30] sm:$0xf]
    %v414 = vld [vmem:[%s400 + $0x34] sm:$0xf]
    %v415 = vld [vmem:[%s400 + $0x38] sm:$0xf]
    %v416 = vld [vmem:[%s400 + $0x3c] sm:$0xf]
    %s417 = scalar_lea.vmem [#allocation5], 3
    %v418 = vld [vmem:[%s417] sm:$0x1]
    %v420 = vlaneseq
    %v421 = vshrl.u32 %v420, 7
    %v422 = vsub.s32 0, %v421
    %v423 = vrot.slane %v418, %v422
    %v441 = vunpack.c.l.b16 %v401
    %v442 = vunpack.c.l.b16 %v402
    %v443 = vunpack.c.l.b16 %v403
    %v444 = vunpack.c.l.b16 %v404
    %v445 = vunpack.c.l.b16 %v405
    %v446 = vunpack.c.l.b16 %v406
    %v447 = vunpack.c.l.b16 %v407
    %v448 = vunpack.c.l.b16 %v408
    %v449 = vunpack.c.l.b16 %v409
    %v450 = vunpack.c.l.b16 %v410
    %v451 = vunpack.c.l.b16 %v411
    %v452 = vunpack.c.l.b16 %v412
    %v453 = vunpack.c.l.b16 %v413
    %v454 = vunpack.c.l.b16 %v414
    %v455 = vunpack.c.l.b16 %v415
    %v456 = vunpack.c.l.b16 %v416
    %v457 = vpack.c.b16 %v442, %v441
    %v458 = vpack.c.b16 %v444, %v443
    %v459 = vpack.c.b16 %v446, %v445
    %v460 = vpack.c.b16 %v448, %v447
    %v461 = vpack.c.b16 %v450, %v449
    %v462 = vpack.c.b16 %v452, %v451
    %v463 = vpack.c.b16 %v454, %v453
    %v464 = vpack.c.b16 %v456, %v455
    %473 = vmatprep.subr.bf16.mxu0 0
    %474 = vmatpush1.bf16.msra.mxu0 %v457
    %475 = vmatprep.subr.bf16.mxu0 0
    %476 = vmatpush1.bf16.msra.mxu0 %v458
    %477 = vmatprep.subr.bf16.mxu0 0
    %478 = vmatpush1.bf16.msra.mxu0 %v459
    %479 = vmatprep.subr.bf16.mxu0 0
    %480 = vmatpush1.bf16.msra.mxu0 %v460
    %481 = vmatprep.subr.bf16.mxu0 0
    %482 = vmatpush1.bf16.msra.mxu0 %v461
    %483 = vmatprep.subr.bf16.mxu0 0
    %484 = vmatpush1.bf16.msra.mxu0 %v462
    %485 = vmatprep.subr.bf16.mxu0 0
    %486 = vmatpush1.bf16.msra.mxu0 %v463
    %487 = vmatprep.subr.bf16.mxu0 0
    %488 = vmatpush1.bf16.msra.mxu0 %v464
    %489 = vmatprep.subr.bf16.mxu0 0
    %490 = vmatpush1.bf16.msra.mxu0 0
    %491 = vmatprep.subr.bf16.mxu0 0
    %492 = vmatpush1.bf16.msra.mxu0 0
    %493 = vmatprep.subr.bf16.mxu0 0
    %494 = vmatpush1.bf16.msra.mxu0 0
    %495 = vmatprep.subr.bf16.mxu0 0
    %496 = vmatpush1.bf16.msra.mxu0 0
    %497 = vmatprep.subr.bf16.mxu0 0
    %498 = vmatpush1.bf16.msra.mxu0 0
    %499 = vmatprep.subr.bf16.mxu0 0
    %500 = vmatpush1.bf16.msra.mxu0 0
    %501 = vmatprep.subr.bf16.mxu0 0
    %502 = vmatpush1.bf16.msra.mxu0 0
    %503 = vmatprep.subr.bf16.mxu0 0
    %504 = vmatpush1.bf16.msra.mxu0 0
    %505 = vmatprep.mubr.bf16.mxu0 0
    %506 = vmatmul.mubr.bf16.gmra.mrb[0].mxu0 %v399
    %v507 = vpop.f32.mrb[0].mxu0
    %v508 = vadd.f32 %v423, %v507
    %v509 = vpop.f32.mrb[0].mxu0
    %v510 = vpop.f32.mrb[0].mxu0
    %v511 = vpop.f32.mrb[0].mxu0
    %512 = vdwg.mxu0
    %v513 = vmax.f32 %v508, 0.0
    %v514 = vpack.c.bf16 %v513, %v513
    %s515 = scalar_lea.vmem [#allocation2], 256
    %v516 = vld [vmem:[%s515] sm:$0xf]
    %v517 = vld [vmem:[%s515 + $0x4] sm:$0xf]
    %v518 = vld [vmem:[%s515 + $0x8] sm:$0xf]
    %v519 = vld [vmem:[%s515 + $0xc] sm:$0xf]
    %v520 = vld [vmem:[%s515 + $0x10] sm:$0xf]
    %v521 = vld [vmem:[%s515 + $0x14] sm:$0xf]
    %v522 = vld [vmem:[%s515 + $0x18] sm:$0xf]
    %v523 = vld [vmem:[%s515 + $0x1c] sm:$0xf]
    %v524 = vld [vmem:[%s515 + $0x20] sm:$0xf]
    %v525 = vld [vmem:[%s515 + $0x24] sm:$0xf]
    %v526 = vld [vmem:[%s515 + $0x28] sm:$0xf]
    %v527 = vld [vmem:[%s515 + $0x2c] sm:$0xf]
    %v528 = vld [vmem:[%s515 + $0x30] sm:$0xf]
    %v529 = vld [vmem:[%s515 + $0x34] sm:$0xf]
    %v530 = vld [vmem:[%s515 + $0x38] sm:$0xf]
    %v531 = vld [vmem:[%s515 + $0x3c] sm:$0xf]
    %s532 = scalar_lea.vmem [#allocation5], 4
    %v533 = vld [vmem:[%s532] sm:$0x1]
    %v535 = vlaneseq
    %v536 = vshrl.u32 %v535, 7
    %v537 = vsub.s32 0, %v536
    %v538 = vrot.slane %v533, %v537
    %v556 = vunpack.c.l.b16 %v516
    %v557 = vunpack.c.l.b16 %v517
    %v558 = vunpack.c.l.b16 %v518
    %v559 = vunpack.c.l.b16 %v519
    %v560 = vunpack.c.l.b16 %v520
    %v561 = vunpack.c.l.b16 %v521
    %v562 = vunpack.c.l.b16 %v522
    %v563 = vunpack.c.l.b16 %v523
    %v564 = vunpack.c.l.b16 %v524
    %v565 = vunpack.c.l.b16 %v525
    %v566 = vunpack.c.l.b16 %v526
    %v567 = vunpack.c.l.b16 %v527
    %v568 = vunpack.c.l.b16 %v528
    %v569 = vunpack.c.l.b16 %v529
    %v570 = vunpack.c.l.b16 %v530
    %v571 = vunpack.c.l.b16 %v531
    %v572 = vpack.c.b16 %v557, %v556
    %v573 = vpack.c.b16 %v559, %v558
    %v574 = vpack.c.b16 %v561, %v560
    %v575 = vpack.c.b16 %v563, %v562
    %v576 = vpack.c.b16 %v565, %v564
    %v577 = vpack.c.b16 %v567, %v566
    %v578 = vpack.c.b16 %v569, %v568
    %v579 = vpack.c.b16 %v571, %v570
    %588 = vmatprep.subr.bf16.mxu0 0
    %589 = vmatpush1.bf16.msra.mxu0 %v572
    %590 = vmatprep.subr.bf16.mxu0 0
    %591 = vmatpush1.bf16.msra.mxu0 %v573
    %592 = vmatprep.subr.bf16.mxu0 0
    %593 = vmatpush1.bf16.msra.mxu0 %v574
    %594 = vmatprep.subr.bf16.mxu0 0
    %595 = vmatpush1.bf16.msra.mxu0 %v575
    %596 = vmatprep.subr.bf16.mxu0 0
    %597 = vmatpush1.bf16.msra.mxu0 %v576
    %598 = vmatprep.subr.bf16.mxu0 0
    %599 = vmatpush1.bf16.msra.mxu0 %v577
    %600 = vmatprep.subr.bf16.mxu0 0
    %601 = vmatpush1.bf16.msra.mxu0 %v578
    %602 = vmatprep.subr.bf16.mxu0 0
    %603 = vmatpush1.bf16.msra.mxu0 %v579
    %604 = vmatprep.subr.bf16.mxu0 0
    %605 = vmatpush1.bf16.msra.mxu0 0
    %606 = vmatprep.subr.bf16.mxu0 0
    %607 = vmatpush1.bf16.msra.mxu0 0
    %608 = vmatprep.subr.bf16.mxu0 0
    %609 = vmatpush1.bf16.msra.mxu0 0
    %610 = vmatprep.subr.bf16.mxu0 0
    %611 = vmatpush1.bf16.msra.mxu0 0
    %612 = vmatprep.subr.bf16.mxu0 0
    %613 = vmatpush1.bf16.msra.mxu0 0
    %614 = vmatprep.subr.bf16.mxu0 0
    %615 = vmatpush1.bf16.msra.mxu0 0
    %616 = vmatprep.subr.bf16.mxu0 0
    %617 = vmatpush1.bf16.msra.mxu0 0
    %618 = vmatprep.subr.bf16.mxu0 0
    %619 = vmatpush1.bf16.msra.mxu0 0
    %620 = vmatprep.mubr.bf16.mxu0 0
    %621 = vmatmul.mubr.bf16.gmra.mrb[0].mxu0 %v514
    %v622 = vpop.f32.mrb[0].mxu0
    %v623 = vadd.f32 %v538, %v622
    %v624 = vpop.f32.mrb[0].mxu0
    %v625 = vpop.f32.mrb[0].mxu0
    %v626 = vpop.f32.mrb[0].mxu0
    %627 = vdwg.mxu0
    %v628 = vmax.f32 %v623, 0.0
    %v629 = vpack.c.bf16 %v628, %v628
    %s630 = scalar_lea.vmem [#allocation2], 320
    %v631 = vld [vmem:[%s630] sm:$0xf]
    %v632 = vld [vmem:[%s630 + $0x4] sm:$0xf]
    %v633 = vld [vmem:[%s630 + $0x8] sm:$0xf]
    %v634 = vld [vmem:[%s630 + $0xc] sm:$0xf]
    %v635 = vld [vmem:[%s630 + $0x10] sm:$0xf]
    %v636 = vld [vmem:[%s630 + $0x14] sm:$0xf]
    %v637 = vld [vmem:[%s630 + $0x18] sm:$0xf]
    %v638 = vld [vmem:[%s630 + $0x1c] sm:$0xf]
    %v639 = vld [vmem:[%s630 + $0x20] sm:$0xf]
    %v640 = vld [vmem:[%s630 + $0x24] sm:$0xf]
    %v641 = vld [vmem:[%s630 + $0x28] sm:$0xf]
    %v642 = vld [vmem:[%s630 + $0x2c] sm:$0xf]
    %v643 = vld [vmem:[%s630 + $0x30] sm:$0xf]
    %v644 = vld [vmem:[%s630 + $0x34] sm:$0xf]
    %v645 = vld [vmem:[%s630 + $0x38] sm:$0xf]
    %v646 = vld [vmem:[%s630 + $0x3c] sm:$0xf]
    %s647 = scalar_lea.vmem [#allocation5], 5
    %v648 = vld [vmem:[%s647] sm:$0x1]
    %v650 = vlaneseq
    %v651 = vshrl.u32 %v650, 7
    %v652 = vsub.s32 0, %v651
    %v653 = vrot.slane %v648, %v652
    %v671 = vunpack.c.l.b16 %v631
    %v672 = vunpack.c.l.b16 %v632
    %v673 = vunpack.c.l.b16 %v633
    %v674 = vunpack.c.l.b16 %v634
    %v675 = vunpack.c.l.b16 %v635
    %v676 = vunpack.c.l.b16 %v636
    %v677 = vunpack.c.l.b16 %v637
    %v678 = vunpack.c.l.b16 %v638
    %v679 = vunpack.c.l.b16 %v639
    %v680 = vunpack.c.l.b16 %v640
    %v681 = vunpack.c.l.b16 %v641
    %v682 = vunpack.c.l.b16 %v642
    %v683 = vunpack.c.l.b16 %v643
    %v684 = vunpack.c.l.b16 %v644
    %v685 = vunpack.c.l.b16 %v645
    %v686 = vunpack.c.l.b16 %v646
    %v687 = vpack.c.b16 %v672, %v671
    %v688 = vpack.c.b16 %v674, %v673
    %v689 = vpack.c.b16 %v676, %v675
    %v690 = vpack.c.b16 %v678, %v677
    %v691 = vpack.c.b16 %v680, %v679
    %v692 = vpack.c.b16 %v682, %v681
    %v693 = vpack.c.b16 %v684, %v683
    %v694 = vpack.c.b16 %v686, %v685
    %703 = vmatprep.subr.bf16.mxu0 0
    %704 = vmatpush1.bf16.msra.mxu0 %v687
    %705 = vmatprep.subr.bf16.mxu0 0
    %706 = vmatpush1.bf16.msra.mxu0 %v688
    %707 = vmatprep.subr.bf16.mxu0 0
    %708 = vmatpush1.bf16.msra.mxu0 %v689
    %709 = vmatprep.subr.bf16.mxu0 0
    %710 = vmatpush1.bf16.msra.mxu0 %v690
    %711 = vmatprep.subr.bf16.mxu0 0
    %712 = vmatpush1.bf16.msra.mxu0 %v691
    %713 = vmatprep.subr.bf16.mxu0 0
    %714 = vmatpush1.bf16.msra.mxu0 %v692
    %715 = vmatprep.subr.bf16.mxu0 0
    %716 = vmatpush1.bf16.msra.mxu0 %v693
    %717 = vmatprep.subr.bf16.mxu0 0
    %718 = vmatpush1.bf16.msra.mxu0 %v694
    %719 = vmatprep.subr.bf16.mxu0 0
    %720 = vmatpush1.bf16.msra.mxu0 0
    %721 = vmatprep.subr.bf16.mxu0 0
    %722 = vmatpush1.bf16.msra.mxu0 0
    %723 = vmatprep.subr.bf16.mxu0 0
    %724 = vmatpush1.bf16.msra.mxu0 0
    %725 = vmatprep.subr.bf16.mxu0 0
    %726 = vmatpush1.bf16.msra.mxu0 0
    %727 = vmatprep.subr.bf16.mxu0 0
    %728 = vmatpush1.bf16.msra.mxu0 0
    %729 = vmatprep.subr.bf16.mxu0 0
    %730 = vmatpush1.bf16.msra.mxu0 0
    %731 = vmatprep.subr.bf16.mxu0 0
    %732 = vmatpush1.bf16.msra.mxu0 0
    %733 = vmatprep.subr.bf16.mxu0 0
    %734 = vmatpush1.bf16.msra.mxu0 0
    %735 = vmatprep.mubr.bf16.mxu0 0
    %736 = vmatmul.mubr.bf16.gmra.mrb[0].mxu0 %v629
    %v737 = vpop.f32.mrb[0].mxu0
    %v738 = vadd.f32 %v653, %v737
    %v739 = vpop.f32.mrb[0].mxu0
    %v740 = vpop.f32.mrb[0].mxu0
    %v741 = vpop.f32.mrb[0].mxu0
    %742 = vdwg.mxu0
    %743 = vst [vmem:[#allocation8] sm:$0xff] %v738
    // Predicated region
    $region26: #{tpu_custom_call.1} parent=1 // pred_check
      _
    $region27: #{tpu_custom_call.1} parent=1 // pred_check_branch
      %745 = sbr.rel (0) target = $region29
    $region28: #{tpu_custom_call.1} parent=1 // pred_region
      %s747 = ssub.s32 128, 128
      %748 = vsyncadd [#allocation4], %s747
      %s750 = sshll.u32 [#allocation8], 4
      %s751 = int_to_ptr.vmem [resolvable:$true] %s750
      %753 = dma.vmem_to_hbm [thread:$0]  %s751, 128, %s3, [#allocation4]
    $region29: #{tpu_custom_call.1} parent=1 // pred_fallthru
      _
    // Predicated region
    $region30: #{tpu_custom_call.1} parent=1 // pred_check
      _
    $region31: #{tpu_custom_call.1} parent=1 // pred_check_branch
      %755 = sbr.rel (0) target = $region33
    $region32: #{tpu_custom_call.1} parent=1 // pred_region
      %756 = dma.done [#allocation4], 128
    $region33: #{tpu_custom_call.1} parent=1 // pred_fallthru
      _
    %757 = vsyncpa [#allocation3], 1
    %758 = vsyncpa [#allocation6], 1
    %759 = vsyncpa [#allocation4], 1

</llo_original>
